<compile_context>
chip_gen: v5e
topology: v5e:2x2
jax: 0.10.0
libtpu: 0.0.40
codegen_flags: <defaults>
</compile_context>

<pallas_src>
import jax
import jax.numpy as jnp
from jax import lax
from jax.experimental import pallas as pl
from jax.experimental.pallas import tpu as pltpu
import numpy as np


def _round_up(x, m):
    return (x + m - 1) // m * m


def _convt_matmul_kernel(w_ref, b_ref, x_ref, o_ref):
    """One grid step = one M tile: out^T tile = W^T @ X^T tile + bias."""
    # w_ref: (Cout, K), b_ref: (Cout, 1), x_ref: (K, TM), o_ref: (Cout, TM)
    o_ref[...] = (
        jnp.dot(w_ref[...], x_ref[...], preferred_element_type=jnp.float32)
        + b_ref[...]
    ).astype(o_ref.dtype)


_VMEM_LIMIT = 32 * 1024 * 1024  # scoped default; also safe on v7x (64 MiB physical)


def _pick_tm(K, cout, M):
    """Largest lane tile (multiple of 128, <= 512) whose working set fits VMEM."""
    tm = max(128, min(512, _round_up(M, 128)))

    def vmem_bytes(t):
        # double-buffered streaming x tile + output tile, resident weights/bias (f32)
        return 4 * (2 * K * t + 2 * cout * t + 2 * cout * K + 2 * cout)

    while tm > 128 and vmem_bytes(tm) > int(0.75 * _VMEM_LIMIT):
        tm -= 128
    return tm


def _convt_matmul(wT, bias_col, xT_pad, tm):
    """wT: (Cout, K), bias_col: (Cout, 1), xT_pad: (K, Mp) -> (Cout, Mp) f32."""
    cout, K = wT.shape
    Mp = xT_pad.shape[1]
    assert Mp % tm == 0
    n_tiles = Mp // tm
    cost = pl.CostEstimate(
        flops=2 * cout * K * Mp,
        transcendentals=0,
        bytes_accessed=4 * (K * Mp + cout * Mp + cout * K + cout),
    )
    return pl.pallas_call(
        _convt_matmul_kernel,
        out_shape=jax.ShapeDtypeStruct((cout, Mp), jnp.float32),
        grid=(n_tiles,),
        in_specs=[
            pl.BlockSpec((cout, K), lambda i: (0, 0)),   # weights (resident)
            pl.BlockSpec((cout, 1), lambda i: (0, 0)),   # bias (resident)
            pl.BlockSpec((K, tm), lambda i: (0, i)),     # streaming x tile
        ],
        out_specs=pl.BlockSpec((cout, tm), lambda i: (0, i)),
        compiler_params=pltpu.CompilerParams(
            dimension_semantics=("parallel",),           # shard M tiles across TCs
            vmem_limit_bytes=_VMEM_LIMIT,
        ),
        cost_estimate=cost,
    )(wT, bias_col, xT_pad)


class RealConv2dDecoder:
    """JAX/Pallas equivalent of RealConv2d_Decoder (ConvTranspose2d + width crop)."""

    def __init__(self, in_channels, out_channels, kernel_size=(1, 1),
                 stride=(1, 1), padding=(0, 0), output_padding=(0, 0),
                 dilation=(1, 1), groups=1, *, key):
        assert groups == 1, "groups > 1 not implemented"
        self.cin, self.cout = in_channels, out_channels
        self.k, self.s, self.p = kernel_size, stride, padding
        self.op, self.d = output_padding, dilation
        kH, kW = kernel_size
        # PyTorch ConvTranspose2d weight layout: (Cin, Cout/groups, kH, kW)
        kw_, kb_ = jax.random.split(key)
        fan_in = in_channels * kH * kW
        bound = 1.0 / np.sqrt(fan_in)
        self.weight = jax.random.uniform(
            kw_, (in_channels, out_channels, kH, kW),
            minval=-bound, maxval=bound, dtype=jnp.float32)
        self.bias = jax.random.uniform(
            kb_, (out_channels,), minval=-bound, maxval=bound, dtype=jnp.float32)

    def __call__(self, x):
        # x: (N, Cin, H, W) float32 (NCHW, same as PyTorch)
        N, Cin, H, W = x.shape
        kH, kW = self.k
        sH, sW = self.s
        pH, pW = self.p
        opH, opW = self.op
        dH, dW = self.d
        Cout = self.cout

        H_out = (H - 1) * sH - 2 * pH + dH * (kH - 1) + opH + 1
        W_out = (W - 1) * sW - 2 * pW + dW * (kW - 1) + opW + 1
        assert H_out > 0 and W_out > 0, "empty ConvTranspose2d output"
        # The module crops out[..., :W]; never compute the cropped columns.
        W_keep = min(W_out, W)

        # --- glue: ConvTranspose2d == stride-1 dilated conv on zero-upsampled input ---
        x_nhwc = jnp.transpose(x, (0, 2, 3, 1))
        H_up = (H - 1) * sH + 1
        W_up = (W - 1) * sW + 1
        x_up = jnp.zeros((N, H_up, W_up, Cin), jnp.float32)
        x_up = x_up.at[:, ::sH, ::sW, :].set(x_nhwc)

        padH_lo = dH * (kH - 1) - pH
        padW_lo = dW * (kW - 1) - pW
        padH_hi = padH_lo + opH
        padW_hi = padW_lo + opW
        # positive amounts -> pad, negative amounts -> crop (general padding combos)
        x_pad = jnp.pad(
            x_up,
            ((0, 0),
             (max(padH_lo, 0), max(padH_hi, 0)),
             (max(padW_lo, 0), max(padW_hi, 0)),
             (0, 0)))
        x_pad = x_pad[:,
                      max(-padH_lo, 0):x_pad.shape[1] - max(-padH_hi, 0),
                      max(-padW_lo, 0):x_pad.shape[2] - max(-padW_hi, 0),
                      :]

        # --- build transposed im2col X^T (K, M), K = (tap, cin) with cin fastest ---
        M = N * H_out * W_keep
        T = kH * kW
        K = T * Cin
        patches = []
        for kh in range(kH):
            for kw in range(kW):
                patches.append(
                    x_pad[:, kh * dH:kh * dH + H_out,
                          kw * dW:kw * dW + W_keep, :])      # (N, H_out, W_keep, Cin)
        xs = jnp.stack(patches)                               # (T, N, H_out, W_keep, Cin)
        xT = jnp.transpose(xs, (0, 4, 1, 2, 3)).reshape(K, M)  # row k = t*Cin + cin

        # equivalent-conv weight: spatially flipped, in/out channels swapped; match K order
        w_flip = jnp.flip(self.weight, axis=(2, 3))            # (Cin, Cout, kH, kW)
        w_k = jnp.transpose(w_flip, (2, 3, 0, 1)).reshape(K, Cout)
        wT = jnp.transpose(w_k)                                # (Cout, K)
        bias_col = self.bias.reshape(Cout, 1)

        # pad M to a multiple of the lane tile (padded columns are cropped afterwards)
        tm = _pick_tm(K, Cout, M)
        Mp = _round_up(M, tm)
        xT_pad = jnp.pad(xT, ((0, 0), (0, Mp - M)))

        # --- Pallas hot path: one lane-dense fused matmul+bias per M tile ---
        outT = _convt_matmul(wT, bias_col, xT_pad, tm)         # (Cout, Mp)

        out = outT[:, :M].reshape(Cout, N, H_out, W_keep)
        return jnp.transpose(out, (1, 0, 2, 3))                # NCHW, width already cropped

    def reference(self, x):
        """Independent XLA reference for the same ConvTranspose2d + crop."""
        kH, kW = self.k
        w_conv = jnp.flip(self.weight, axis=(2, 3)).transpose(1, 0, 2, 3)  # OIHW
        padH_lo = self.d[0] * (kH - 1) - self.p[0]
        padW_lo = self.d[1] * (kW - 1) - self.p[1]
        pad = [(padH_lo, padH_lo + self.op[0]), (padW_lo, padW_lo + self.op[1])]
        y = lax.conv_general_dilated(
            x, w_conv, window_strides=(1, 1), padding=pad,
            lhs_dilation=self.s, rhs_dilation=self.d,
            dimension_numbers=("NCHW", "OIHW", "NCHW"))
        y = y + self.bias.reshape(1, -1, 1, 1)
        return y[..., :x.shape[-1]]


if __name__ == "__main__":
    key = jax.random.PRNGKey(0)
    k_x, k_mod = jax.random.split(key)

    # small DCCRN-decoder-like hyperparameters
    N, Cin, Cout, H, W = 2, 4, 6, 16, 8
    x = jax.random.normal(k_x, (N, Cin, H, W), dtype=jnp.float32)

    mod = RealConv2dDecoder(
        in_channels=Cin, out_channels=Cout,
        kernel_size=(3, 2), stride=(2, 1), padding=(1, 0),
        output_padding=(1, 0), dilation=(1, 1), groups=1, key=k_mod)

    fwd = jax.jit(lambda inp: mod(inp))
    out = jax.block_until_ready(fwd(x))

    ref = jax.block_until_ready(mod.reference(x))
    assert out.shape == (N, Cout, 32, W), out.shape
    np.testing.assert_allclose(np.asarray(out), np.asarray(ref),
                               rtol=1e-4, atol=1e-4)
    print("KERNEL_OK")
</pallas_src>

<mosaic_0001>
module attributes {stable_mosaic.version = 11 : i64} {
  func.func @_convt_matmul_kernel(%arg0: i32, %arg1: memref<6x24xf32, #tpu.memory_space<vmem>>, %arg2: memref<6x1xf32, #tpu.memory_space<vmem>>, %arg3: memref<24x512xf32, #tpu.memory_space<vmem>>, %arg4: memref<6x512xf32, #tpu.memory_space<vmem>>) attributes {dimension_semantics = [#tpu.dimension_semantics<parallel>], iteration_bounds = array<i64: 1>, scalar_prefetch = 0 : i64, scratch_operands = 0 : i64, tpu.core_type = #tpu.core_type<tc>, window_params = [{pipeline_mode = #tpu.pipeline_mode<synchronous>, transform_indices = @transform_0, window_bounds = array<i64: 6, 24>}, {pipeline_mode = #tpu.pipeline_mode<synchronous>, transform_indices = @transform_1, window_bounds = array<i64: 6, 1>}, {transform_indices = @transform_2, window_bounds = array<i64: 24, 512>}, {transform_indices = @transform_3, window_bounds = array<i64: 6, 512>}]} {
    %c0 = arith.constant 0 : index
    %c0_0 = arith.constant 0 : index
    %0 = vector.load %arg1[%c0, %c0_0] : memref<6x24xf32, #tpu.memory_space<vmem>>, vector<6x24xf32>
    %c0_1 = arith.constant 0 : index
    %c0_2 = arith.constant 0 : index
    %1 = vector.load %arg3[%c0_1, %c0_2] : memref<24x512xf32, #tpu.memory_space<vmem>>, vector<24x512xf32>
    %cst = arith.constant dense<0.000000e+00> : vector<6x512xf32>
    %2 = tpu.matmul %0, %1, %cst {dimension_numbers = #tpu.dot_dimension_numbers<[1], [0], [0], [1], [0, 0, 1, 1], [], []>} : vector<6x24xf32>, vector<24x512xf32>, vector<6x512xf32> -> vector<6x512xf32>
    %c0_3 = arith.constant 0 : index
    %c0_4 = arith.constant 0 : index
    %3 = vector.load %arg2[%c0_3, %c0_4] : memref<6x1xf32, #tpu.memory_space<vmem>>, vector<6x1xf32>
    %4 = vector.broadcast %3 : vector<6x1xf32> to vector<6x512xf32>
    %5 = arith.addf %2, %4 : vector<6x512xf32>
    %c0_5 = arith.constant 0 : index
    %c0_6 = arith.constant 0 : index
    %6 = vector.load %arg4[%c0_5, %c0_6] : memref<6x512xf32, #tpu.memory_space<vmem>>, vector<6x512xf32>
    tpu.vector_store %arg4[%c0_5, %c0_6], %5 {strides = array<i32>} : memref<6x512xf32, #tpu.memory_space<vmem>>, vector<6x512xf32>,
    return
  }
  func.func @transform_0(%arg0: i32) -> (i32, i32) {
    %c0_i32 = arith.constant 0 : i32
    %c0_i32_0 = arith.constant 0 : i32
    %c0_i32_1 = arith.constant 0 : i32
    return %c0_i32, %c0_i32_0 : i32, i32
  }
  func.func @transform_1(%arg0: i32) -> (i32, i32) {
    %c0_i32 = arith.constant 0 : i32
    %c0_i32_0 = arith.constant 0 : i32
    %c0_i32_1 = arith.constant 0 : i32
    return %c0_i32, %c0_i32_0 : i32, i32
  }
  func.func @transform_2(%arg0: i32) -> (i32, i32) {
    %c0_i32 = arith.constant 0 : i32
    %c0_i32_0 = arith.constant 0 : i32
    return %c0_i32, %arg0 : i32, i32
  }
  func.func @transform_3(%arg0: i32) -> (i32, i32) {
    %c0_i32 = arith.constant 0 : i32
    %c0_i32_0 = arith.constant 0 : i32
    return %c0_i32, %arg0 : i32, i32
  }
}

</mosaic_0001>

<llo_original>
// kernel: _lambda_.1
$region0: #{_lambda_.1}
  #allocation0 [shape = 'u32[]', space=smem, size = 0x4, offset = 0x4, fixed_abs, tag = 'smem constant byte address 0x4 - core index']
  #allocation1 [shape = 'u32[72,128]{1,0:T(1,128)}', space=vmem, size = 0x9000, scoped, tag = 'internal scratch']
  %s0 = inlined_call_operand.vmem [shape: f32[6,24], index: 0, kind: input, shape index: {}]
  %s1 = inlined_call_operand.vmem [shape: f32[6,1], index: 1, kind: input, shape index: {}]
  %s2 = inlined_call_operand.vmem [shape: f32[24,512], index: 2, kind: input, shape index: {}]
  %s3 = inlined_call_operand.vmem [shape: f32[6,512], index: 3, kind: output, shape index: {}]
  %s4 = sld [smem:[#allocation0]]
  $region22: #{_lambda_.1} parent=0
    _
  %s6 = ssub.s32 1, %s4
  %s7 = scalar_select 0, %s6, %s4
  // Predicated region
  $region2: #{_lambda_.1} parent=0 // pred_check
    _
  $region3: #{_lambda_.1} parent=0 // pred_check_branch
    %9 = sbr.rel (0) target = $region5
  $region4: #{_lambda_.1} parent=0 // pred_region
    _
  $region5: #{_lambda_.1} parent=0 // pred_fallthru
    _
  // Predicated region
  $region6: #{_lambda_.1} parent=0 // pred_check
    _
  $region7: #{_lambda_.1} parent=0 // pred_check_branch
    %11 = sbr.rel (0) target = $region9
  $region8: #{_lambda_.1} parent=0 // pred_region
    _
  $region9: #{_lambda_.1} parent=0 // pred_fallthru
    _
  // Predicated region
  $region10: #{_lambda_.1} parent=0 // pred_check
    _
  $region11: #{_lambda_.1} parent=0 // pred_check_branch
    %13 = sbr.rel (0) target = $region13
  $region12: #{_lambda_.1} parent=0 // pred_region
    _
  $region13: #{_lambda_.1} parent=0 // pred_fallthru
    _
  %v14 = vld [vmem:[%s0] sm:$0x3f]
  %v15 = vld [vmem:[%s2] sm:$0xff]
  %v16 = vld [vmem:[%s2 + $0x8] sm:$0xff]
  %v17 = vld [vmem:[%s2 + $0x10] sm:$0xff]
  %v18 = vld [vmem:[%s2 + $0x18] sm:$0xff]
  %v19 = vld [vmem:[%s2 + $0x20] sm:$0xff]
  %v20 = vld [vmem:[%s2 + $0x28] sm:$0xff]
  %v21 = vld [vmem:[%s2 + $0x30] sm:$0xff]
  %v22 = vld [vmem:[%s2 + $0x38] sm:$0xff]
  %v23 = vld [vmem:[%s2 + $0x40] sm:$0xff]
  %v24 = vld [vmem:[%s2 + $0x48] sm:$0xff]
  %v25 = vld [vmem:[%s2 + $0x50] sm:$0xff]
  %v26 = vld [vmem:[%s2 + $0x58] sm:$0xff]
  %v27 = vld [vmem:[%s1] sm:$0x3f]
  %29 = vset.pattern.permute.xlu0 0
  %30 = vperm.xlu0 %29, %v27
  %v31 = vpop.permute.xlu0 %30
  %vm33 = vcmask 195584
  %v35 = vsel %vm33, %v14, 0
  %37 = vmatpush.msra.mxu0 0.0
  %38 = vmatpush.msra.mxu0 0.0
  %39 = vmatpush.msra.mxu0 0.0
  %40 = vmatpush.msra.mxu0 0.0
  %41 = vmatpush.msra.mxu0 0.0
  %42 = vmatpush.msra.mxu0 0.0
  %43 = vmatpush.msra.mxu0 0.0
  %44 = vmatpush.msra.mxu0 0.0
  %45 = vmatpush.msra.mxu0 0.0
  %46 = vmatpush.msra.mxu0 0.0
  %47 = vmatpush.msra.mxu0 0.0
  %48 = vmatpush.msra.mxu0 0.0
  %49 = vmatpush.msra.mxu0 0.0
  %50 = vmatpush.msra.mxu0 %v23
  %51 = vmatpush.msra.mxu0 %v19
  %52 = vmatpush.msra.mxu0 %v15
  %53 = vmatmul.f32.gmra.mxu0 %v35
  %v54 = vpop.f32.mrf.mxu0
  %v55 = vadd.f32 %v31, %v54
  %56 = vdwg.mxu0
  %57 = vmatpush.msra.mxu0 0.0
  %58 = vmatpush.msra.mxu0 0.0
  %59 = vmatpush.msra.mxu0 0.0
  %60 = vmatpush.msra.mxu0 0.0
  %61 = vmatpush.msra.mxu0 0.0
  %62 = vmatpush.msra.mxu0 0.0
  %63 = vmatpush.msra.mxu0 0.0
  %64 = vmatpush.msra.mxu0 0.0
  %65 = vmatpush.msra.mxu0 0.0
  %66 = vmatpush.msra.mxu0 0.0
  %67 = vmatpush.msra.mxu0 0.0
  %68 = vmatpush.msra.mxu0 0.0
  %69 = vmatpush.msra.mxu0 0.0
  %70 = vmatpush.msra.mxu0 %v24
  %71 = vmatpush.msra.mxu0 %v20
  %72 = vmatpush.msra.mxu0 %v16
  %73 = vmatmul.f32.gmra.mxu0 %v35
  %v74 = vpop.f32.mrf.mxu0
  %v75 = vadd.f32 %v31, %v74
  %76 = vdwg.mxu0
  %77 = vmatpush.msra.mxu0 0.0
  %78 = vmatpush.msra.mxu0 0.0
  %79 = vmatpush.msra.mxu0 0.0
  %80 = vmatpush.msra.mxu0 0.0
  %81 = vmatpush.msra.mxu0 0.0
  %82 = vmatpush.msra.mxu0 0.0
  %83 = vmatpush.msra.mxu0 0.0
  %84 = vmatpush.msra.mxu0 0.0
  %85 = vmatpush.msra.mxu0 0.0
  %86 = vmatpush.msra.mxu0 0.0
  %87 = vmatpush.msra.mxu0 0.0
  %88 = vmatpush.msra.mxu0 0.0
  %89 = vmatpush.msra.mxu0 0.0
  %90 = vmatpush.msra.mxu0 %v25
  %91 = vmatpush.msra.mxu0 %v21
  %92 = vmatpush.msra.mxu0 %v17
  %93 = vmatmul.f32.gmra.mxu0 %v35
  %v94 = vpop.f32.mrf.mxu0
  %v95 = vadd.f32 %v31, %v94
  %96 = vdwg.mxu0
  %97 = vmatpush.msra.mxu0 0.0
  %98 = vmatpush.msra.mxu0 0.0
  %99 = vmatpush.msra.mxu0 0.0
  %100 = vmatpush.msra.mxu0 0.0
  %101 = vmatpush.msra.mxu0 0.0
  %102 = vmatpush.msra.mxu0 0.0
  %103 = vmatpush.msra.mxu0 0.0
  %104 = vmatpush.msra.mxu0 0.0
  %105 = vmatpush.msra.mxu0 0.0
  %106 = vmatpush.msra.mxu0 0.0
  %107 = vmatpush.msra.mxu0 0.0
  %108 = vmatpush.msra.mxu0 0.0
  %109 = vmatpush.msra.mxu0 0.0
  %110 = vmatpush.msra.mxu0 %v26
  %111 = vmatpush.msra.mxu0 %v22
  %112 = vmatpush.msra.mxu0 %v18
  %113 = vmatmul.f32.gmra.mxu0 %v35
  %v114 = vpop.f32.mrf.mxu0
  %v115 = vadd.f32 %v31, %v114
  %116 = vdwg.mxu0
  %117 = vst [vmem:[%s3] sm:$0x3f] %v55
  %118 = vst [vmem:[%s3 + $0x8] sm:$0x3f] %v75
  %119 = vst [vmem:[%s3 + $0x10] sm:$0x3f] %v95
  %120 = vst [vmem:[%s3 + $0x18] sm:$0x3f] %v115
  // Predicated region
  $region14: #{_lambda_.1} parent=0 // pred_check
    _
  $region15: #{_lambda_.1} parent=0 // pred_check_branch
    %122 = sbr.rel (0) target = $region17
  $region16: #{_lambda_.1} parent=0 // pred_region
    _
  $region17: #{_lambda_.1} parent=0 // pred_fallthru
    _
  // Predicated region
  $region18: #{_lambda_.1} parent=0 // pred_check
    _
  $region19: #{_lambda_.1} parent=0 // pred_check_branch
    %124 = sbr.rel (0) target = $region21
  $region20: #{_lambda_.1} parent=0 // pred_region
    _
  $region21: #{_lambda_.1} parent=0 // pred_fallthru
    _

</llo_original>
